<compile_context>
chip_gen: v6e
topology: v6e:2x2x1
jax: 0.10.0
libtpu: 0.0.40
codegen_flags: <defaults>
</compile_context>

<pallas_src>
import math
import jax
import jax.numpy as jnp
from jax.experimental import pallas as pl
from jax.experimental.pallas import tpu as pltpu


# ---------------------------------------------------------------------------
# Fused Fcomb kernel: one (batch element, spatial tile) per grid step.
# ---------------------------------------------------------------------------
def _fcomb_kernel(f_ref, z_ref, w1f_ref, w1z_ref, b1_ref,
                  w2_ref, b2_ref, w3_ref, b3_ref, o_ref):
    # f_ref:  (1, Cf, THW)  feature-map tile of one batch element, spatial-minor
    # z_ref:  (1, L, 1)     latent sample of that batch element (column vector)
    # w1f:    (Cf, Cf)  w1z: (Cf, L)  b1: (Cf, 1)   conv1 split feature/latent
    # w2:     (Cf, Cf)  b2: (Cf, 1)
    # w3:     (Nc, Cf)  b3: (Nc, 1)
    # o_ref:  (1, Nc, THW)
    x = f_ref[0]                                     # (Cf, THW), lane-dense
    zc = z_ref[0]                                    # (L, 1)

    # conv1 on concat([f, z_broadcast]) == W1f @ f + (W1z @ z + b1)
    zbias = jnp.dot(w1z_ref[...], zc,
                    preferred_element_type=jnp.float32) + b1_ref[...]  # (Cf,1)
    h = jnp.dot(w1f_ref[...], x, preferred_element_type=jnp.float32) + zbias
    h = jnp.maximum(h, 0.0)                          # ReLU

    # conv2 + ReLU
    h = jnp.dot(w2_ref[...], h,
                preferred_element_type=jnp.float32) + b2_ref[...]
    h = jnp.maximum(h, 0.0)

    # conv3 (no activation)
    y = jnp.dot(w3_ref[...], h,
                preferred_element_type=jnp.float32) + b3_ref[...]
    o_ref[0] = y.astype(o_ref.dtype)


def _pick_spatial_tile(hw, max_tile=2048):
    """Single tile for small images; lane-aligned chunks for large ones."""
    if hw <= max_tile:
        return hw
    for t in range(max_tile, 127, -128):             # multiples of 128 that divide HW
        if t % 128 == 0 and hw % t == 0:
            return t
    return hw                                        # fallback: one big tile


def fcomb_forward(params, feature_map, z):
    """feature_map: (N, Cf, H, W) NCHW; z: (N, L). Returns (N, Nc, H, W)."""
    N, Cf, H, W = feature_map.shape
    L = z.shape[1]
    HW = H * W
    THW = _pick_spatial_tile(HW)
    w1f, w1z, b1 = params["conv1"]
    w2, b2 = params["conv2"]
    w3, b3 = params["conv3"]
    Nc = w3.shape[0]

    f2 = feature_map.reshape(N, Cf, HW)              # free reshape (NCHW layout)
    z3 = z.reshape(N, L, 1)                          # per-batch column vector

    out = pl.pallas_call(
        _fcomb_kernel,
        out_shape=jax.ShapeDtypeStruct((N, Nc, HW), feature_map.dtype),
        grid=(N, HW // THW),
        in_specs=[
            pl.BlockSpec((1, Cf, THW), lambda n, s: (n, 0, s)),   # feature map
            pl.BlockSpec((1, L, 1), lambda n, s: (n, 0, 0)),      # z
            pl.BlockSpec((Cf, Cf), lambda n, s: (0, 0)),          # w1 (feature part)
            pl.BlockSpec((Cf, L), lambda n, s: (0, 0)),           # w1 (latent part)
            pl.BlockSpec((Cf, 1), lambda n, s: (0, 0)),           # b1
            pl.BlockSpec((Cf, Cf), lambda n, s: (0, 0)),          # w2
            pl.BlockSpec((Cf, 1), lambda n, s: (0, 0)),           # b2
            pl.BlockSpec((Nc, Cf), lambda n, s: (0, 0)),          # w3
            pl.BlockSpec((Nc, 1), lambda n, s: (0, 0)),           # b3
        ],
        out_specs=pl.BlockSpec((1, Nc, THW), lambda n, s: (n, 0, s)),
        compiler_params=pltpu.CompilerParams(
            dimension_semantics=("parallel", "parallel")),
    )(f2, z3, w1f, w1z, b1, w2, b2, w3, b3)
    return out.reshape(N, Nc, H, W)


# ---------------------------------------------------------------------------
# Parameter init (deterministic, PyTorch-default-style uniform bounds).
# conv1 weight is stored pre-split into feature / latent parts; biases are
# stored as (C, 1) columns so they broadcast over the lane (spatial) axis.
# ---------------------------------------------------------------------------
def init_params(key, unet_output_channels, latent_dim, num_classes):
    Cf, L = unet_output_channels, latent_dim

    def uinit(k, shape, fan_in):
        bound = 1.0 / math.sqrt(fan_in)
        return jax.random.uniform(k, shape, jnp.float32, -bound, bound)

    key, k1, k2, k3 = jax.random.split(key, 4)
    kw1, kb1 = jax.random.split(k1)
    kw2, kb2 = jax.random.split(k2)
    kw3, kb3 = jax.random.split(k3)

    w1 = uinit(kw1, (Cf, Cf + L), Cf + L)            # full conv1 weight (O, I)
    return {
        "conv1": (w1[:, :Cf], w1[:, Cf:], uinit(kb1, (Cf, 1), Cf + L)),
        "conv2": (uinit(kw2, (Cf, Cf), Cf), uinit(kb2, (Cf, 1), Cf)),
        "conv3": (uinit(kw3, (num_classes, Cf), Cf),
                  uinit(kb3, (num_classes, 1), Cf)),
    }


# ---------------------------------------------------------------------------
# Pure-JAX reference (mirrors the PyTorch module exactly: broadcast z, concat,
# three 1x1 convs with ReLU in between). For correctness checking only.
# ---------------------------------------------------------------------------
def _reference(params, feature_map, z):
    N, Cf, H, W = feature_map.shape
    w1f, w1z, b1 = params["conv1"]
    w2, b2 = params["conv2"]
    w3, b3 = params["conv3"]
    w1 = jnp.concatenate([w1f, w1z], axis=1)         # (Cf, Cf + L)

    zb = jnp.broadcast_to(z[:, :, None, None], (N, z.shape[1], H, W))
    h = jnp.concatenate([feature_map, zb], axis=1)   # (N, Cf+L, H, W)

    h = jnp.einsum('oc,nchw->nohw', w1, h) + b1[:, 0][None, :, None, None]
    h = jnp.maximum(h, 0.0)
    h = jnp.einsum('oc,nchw->nohw', w2, h) + b2[:, 0][None, :, None, None]
    h = jnp.maximum(h, 0.0)
    y = jnp.einsum('oc,nchw->nohw', w3, h) + b3[:, 0][None, :, None, None]
    return y


if __name__ == "__main__":
    # Small shapes consistent with the module.
    N, Cf, H, W = 2, 32, 16, 16       # batch, unet_output_channels, spatial
    latent_dim = 6
    num_classes = 4

    key = jax.random.PRNGKey(0)
    key, kf, kz, kp = jax.random.split(key, 4)
    feature_map = jax.random.normal(kf, (N, Cf, H, W), jnp.float32)  # NCHW
    z = jax.random.normal(kz, (N, latent_dim), jnp.float32)
    params = init_params(kp, Cf, latent_dim, num_classes)

    out = fcomb_forward(params, feature_map, z)
    out = jax.block_until_ready(out)

    ref = _reference(params, feature_map, z)
    assert out.shape == (N, num_classes, H, W)
    assert jnp.allclose(out, ref, atol=1e-4, rtol=1e-4)

    print("KERNEL_OK")
</pallas_src>

<mosaic_0001>
module attributes {stable_mosaic.version = 11 : i64} {
  func.func @_fcomb_kernel(%arg0: i32, %arg1: i32, %arg2: memref<1x32x256xf32, #tpu.memory_space<vmem>>, %arg3: memref<1x6x1xf32, #tpu.memory_space<vmem>>, %arg4: memref<32x32xf32, #tpu.memory_space<vmem>>, %arg5: memref<32x6xf32, #tpu.memory_space<vmem>>, %arg6: memref<32x1xf32, #tpu.memory_space<vmem>>, %arg7: memref<32x32xf32, #tpu.memory_space<vmem>>, %arg8: memref<32x1xf32, #tpu.memory_space<vmem>>, %arg9: memref<4x32xf32, #tpu.memory_space<vmem>>, %arg10: memref<4x1xf32, #tpu.memory_space<vmem>>, %arg11: memref<1x4x256xf32, #tpu.memory_space<vmem>>) attributes {dimension_semantics = [#tpu.dimension_semantics<parallel>, #tpu.dimension_semantics<parallel>], iteration_bounds = array<i64: 2, 1>, scalar_prefetch = 0 : i64, scratch_operands = 0 : i64, tpu.core_type = #tpu.core_type<tc>, window_params = [{transform_indices = @transform_0, window_bounds = array<i64: 1, 32, 256>}, {transform_indices = @transform_1, window_bounds = array<i64: 1, 6, 1>}, {pipeline_mode = #tpu.pipeline_mode<synchronous>, transform_indices = @transform_2, window_bounds = array<i64: 32, 32>}, {pipeline_mode = #tpu.pipeline_mode<synchronous>, transform_indices = @transform_3, window_bounds = array<i64: 32, 6>}, {pipeline_mode = #tpu.pipeline_mode<synchronous>, transform_indices = @transform_4, window_bounds = array<i64: 32, 1>}, {pipeline_mode = #tpu.pipeline_mode<synchronous>, transform_indices = @transform_5, window_bounds = array<i64: 32, 32>}, {pipeline_mode = #tpu.pipeline_mode<synchronous>, transform_indices = @transform_6, window_bounds = array<i64: 32, 1>}, {pipeline_mode = #tpu.pipeline_mode<synchronous>, transform_indices = @transform_7, window_bounds = array<i64: 4, 32>}, {pipeline_mode = #tpu.pipeline_mode<synchronous>, transform_indices = @transform_8, window_bounds = array<i64: 4, 1>}, {transform_indices = @transform_9, window_bounds = array<i64: 1, 4, 256>}]} {
    %c0 = arith.constant 0 : index
    %c0_0 = arith.constant 0 : index
    %c0_1 = arith.constant 0 : index
    %0 = vector.load %arg2[%c0, %c0_0, %c0_1] : memref<1x32x256xf32, #tpu.memory_space<vmem>>, vector<1x32x256xf32>
    %1 = vector.shape_cast %0 : vector<1x32x256xf32> to vector<32x256xf32>
    %c0_2 = arith.constant 0 : index
    %c0_3 = arith.constant 0 : index
    %c0_4 = arith.constant 0 : index
    %2 = vector.load %arg3[%c0_2, %c0_3, %c0_4] : memref<1x6x1xf32, #tpu.memory_space<vmem>>, vector<1x6x1xf32>
    %3 = vector.shape_cast %2 : vector<1x6x1xf32> to vector<6x1xf32>
    %c0_5 = arith.constant 0 : index
    %c0_6 = arith.constant 0 : index
    %4 = vector.load %arg5[%c0_5, %c0_6] : memref<32x6xf32, #tpu.memory_space<vmem>>, vector<32x6xf32>
    %cst = arith.constant dense<0.000000e+00> : vector<32x1xf32>
    %5 = tpu.matmul %4, %3, %cst {dimension_numbers = #tpu.dot_dimension_numbers<[1], [0], [0], [1], [0, 0, 1, 1], [], []>} : vector<32x6xf32>, vector<6x1xf32>, vector<32x1xf32> -> vector<32x1xf32>
    %c0_7 = arith.constant 0 : index
    %c0_8 = arith.constant 0 : index
    %6 = vector.load %arg6[%c0_7, %c0_8] : memref<32x1xf32, #tpu.memory_space<vmem>>, vector<32x1xf32>
    %7 = arith.addf %5, %6 : vector<32x1xf32>
    %c0_9 = arith.constant 0 : index
    %c0_10 = arith.constant 0 : index
    %8 = vector.load %arg4[%c0_9, %c0_10] : memref<32x32xf32, #tpu.memory_space<vmem>>, vector<32x32xf32>
    %cst_11 = arith.constant dense<0.000000e+00> : vector<32x256xf32>
    %9 = tpu.matmul %8, %1, %cst_11 {dimension_numbers = #tpu.dot_dimension_numbers<[1], [0], [0], [1], [0, 0, 1, 1], [], []>} : vector<32x32xf32>, vector<32x256xf32>, vector<32x256xf32> -> vector<32x256xf32>
    %10 = vector.broadcast %7 : vector<32x1xf32> to vector<32x256xf32>
    %11 = arith.addf %9, %10 : vector<32x256xf32>
    %cst_12 = arith.constant 0.000000e+00 : f32
    %12 = vector.broadcast %cst_12 : f32 to vector<32x256xf32>
    %13 = arith.maximumf %11, %12 : vector<32x256xf32>
    %c0_13 = arith.constant 0 : index
    %c0_14 = arith.constant 0 : index
    %14 = vector.load %arg7[%c0_13, %c0_14] : memref<32x32xf32, #tpu.memory_space<vmem>>, vector<32x32xf32>
    %cst_15 = arith.constant dense<0.000000e+00> : vector<32x256xf32>
    %15 = tpu.matmul %14, %13, %cst_15 {dimension_numbers = #tpu.dot_dimension_numbers<[1], [0], [0], [1], [0, 0, 1, 1], [], []>} : vector<32x32xf32>, vector<32x256xf32>, vector<32x256xf32> -> vector<32x256xf32>
    %c0_16 = arith.constant 0 : index
    %c0_17 = arith.constant 0 : index
    %16 = vector.load %arg8[%c0_16, %c0_17] : memref<32x1xf32, #tpu.memory_space<vmem>>, vector<32x1xf32>
    %17 = vector.broadcast %16 : vector<32x1xf32> to vector<32x256xf32>
    %18 = arith.addf %15, %17 : vector<32x256xf32>
    %cst_18 = arith.constant 0.000000e+00 : f32
    %19 = vector.broadcast %cst_18 : f32 to vector<32x256xf32>
    %20 = arith.maximumf %18, %19 : vector<32x256xf32>
    %c0_19 = arith.constant 0 : index
    %c0_20 = arith.constant 0 : index
    %21 = vector.load %arg9[%c0_19, %c0_20] : memref<4x32xf32, #tpu.memory_space<vmem>>, vector<4x32xf32>
    %cst_21 = arith.constant dense<0.000000e+00> : vector<4x256xf32>
    %22 = tpu.matmul %21, %20, %cst_21 {dimension_numbers = #tpu.dot_dimension_numbers<[1], [0], [0], [1], [0, 0, 1, 1], [], []>} : vector<4x32xf32>, vector<32x256xf32>, vector<4x256xf32> -> vector<4x256xf32>
    %c0_22 = arith.constant 0 : index
    %c0_23 = arith.constant 0 : index
    %23 = vector.load %arg10[%c0_22, %c0_23] : memref<4x1xf32, #tpu.memory_space<vmem>>, vector<4x1xf32>
    %24 = vector.broadcast %23 : vector<4x1xf32> to vector<4x256xf32>
    %25 = arith.addf %22, %24 : vector<4x256xf32>
    %c0_24 = arith.constant 0 : index
    %c0_25 = arith.constant 0 : index
    %c0_26 = arith.constant 0 : index
    %26 = vector.load %arg11[%c0_24, %c0_25, %c0_26] : memref<1x4x256xf32, #tpu.memory_space<vmem>>, vector<1x4x256xf32>
    %27 = vector.shape_cast %26 : vector<1x4x256xf32> to vector<4x256xf32>
    %28 = vector.shape_cast %25 : vector<4x256xf32> to vector<1x4x256xf32>
    tpu.vector_store %arg11[%c0_24, %c0_25, %c0_26], %28 {strides = array<i32>} : memref<1x4x256xf32, #tpu.memory_space<vmem>>, vector<1x4x256xf32>,
    return
  }
  func.func @transform_0(%arg0: i32, %arg1: i32) -> (i32, i32, i32) {
    %c0_i32 = arith.constant 0 : i32
    %c0_i32_0 = arith.constant 0 : i32
    return %arg0, %c0_i32, %arg1 : i32, i32, i32
  }
  func.func @transform_1(%arg0: i32, %arg1: i32) -> (i32, i32, i32) {
    %c0_i32 = arith.constant 0 : i32
    %c0_i32_0 = arith.constant 0 : i32
    %c0_i32_1 = arith.constant 0 : i32
    return %arg0, %c0_i32, %c0_i32_0 : i32, i32, i32
  }
  func.func @transform_2(%arg0: i32, %arg1: i32) -> (i32, i32) {
    %c0_i32 = arith.constant 0 : i32
    %c0_i32_0 = arith.constant 0 : i32
    %c0_i32_1 = arith.constant 0 : i32
    return %c0_i32, %c0_i32_0 : i32, i32
  }
  func.func @transform_3(%arg0: i32, %arg1: i32) -> (i32, i32) {
    %c0_i32 = arith.constant 0 : i32
    %c0_i32_0 = arith.constant 0 : i32
    %c0_i32_1 = arith.constant 0 : i32
    return %c0_i32, %c0_i32_0 : i32, i32
  }
  func.func @transform_4(%arg0: i32, %arg1: i32) -> (i32, i32) {
    %c0_i32 = arith.constant 0 : i32
    %c0_i32_0 = arith.constant 0 : i32
    %c0_i32_1 = arith.constant 0 : i32
    return %c0_i32, %c0_i32_0 : i32, i32
  }
  func.func @transform_5(%arg0: i32, %arg1: i32) -> (i32, i32) {
    %c0_i32 = arith.constant 0 : i32
    %c0_i32_0 = arith.constant 0 : i32
    %c0_i32_1 = arith.constant 0 : i32
    return %c0_i32, %c0_i32_0 : i32, i32
  }
  func.func @transform_6(%arg0: i32, %arg1: i32) -> (i32, i32) {
    %c0_i32 = arith.constant 0 : i32
    %c0_i32_0 = arith.constant 0 : i32
    %c0_i32_1 = arith.constant 0 : i32
    return %c0_i32, %c0_i32_0 : i32, i32
  }
  func.func @transform_7(%arg0: i32, %arg1: i32) -> (i32, i32) {
    %c0_i32 = arith.constant 0 : i32
    %c0_i32_0 = arith.constant 0 : i32
    %c0_i32_1 = arith.constant 0 : i32
    return %c0_i32, %c0_i32_0 : i32, i32
  }
  func.func @transform_8(%arg0: i32, %arg1: i32) -> (i32, i32) {
    %c0_i32 = arith.constant 0 : i32
    %c0_i32_0 = arith.constant 0 : i32
    %c0_i32_1 = arith.constant 0 : i32
    return %c0_i32, %c0_i32_0 : i32, i32
  }
  func.func @transform_9(%arg0: i32, %arg1: i32) -> (i32, i32, i32) {
    %c0_i32 = arith.constant 0 : i32
    %c0_i32_0 = arith.constant 0 : i32
    return %arg0, %c0_i32, %arg1 : i32, i32, i32
  }
}

</mosaic_0001>

<llo_original>
// kernel: tpu_custom_call.1
$region0: #{tpu_custom_call.1}
  #allocation0 [shape = 'u32[]', space=smem, size = 0x4, offset = 0x4, fixed_abs, tag = 'smem constant byte address 0x4 - core index']
  #allocation1 [shape = 'u32[144,128]{1,0:T(1,128)}', space=vmem, size = 0x12000, scoped, tag = 'internal scratch']
  %s0 = inlined_call_operand.vmem [shape: f32[2,32,256], index: 0, kind: input, shape index: {}]
  %s1 = inlined_call_operand.vmem [shape: f32[2,6,1], index: 1, kind: input, shape index: {}]
  %s2 = inlined_call_operand.hbm [shape: f32[32,32], index: 2, kind: input, shape index: {}]
  %s3 = inlined_call_operand.vmem [shape: f32[32,6], index: 3, kind: input, shape index: {}]
  %s4 = inlined_call_operand.vmem [shape: f32[32,1], index: 4, kind: input, shape index: {}]
  %s5 = inlined_call_operand.hbm [shape: f32[32,32], index: 5, kind: input, shape index: {}]
  %s6 = inlined_call_operand.vmem [shape: f32[32,1], index: 6, kind: input, shape index: {}]
  %s7 = inlined_call_operand.vmem [shape: f32[4,32], index: 7, kind: input, shape index: {}]
  %s8 = inlined_call_operand.vmem [shape: f32[4,1], index: 8, kind: input, shape index: {}]
  %s9 = inlined_call_operand.hbm [shape: f32[2,4,256], index: 9, kind: output, shape index: {}]
  %s10 = sld [smem:[#allocation0]]
  $region77: #{tpu_custom_call.1} parent=0
    _
  %s12 = ssub.s32 1, %s10
  %s13 = scalar_select 0, %s12, %s10
  $region1: #{tpu_custom_call.1} parent=0
    #allocation2 [shape = 'u8[16384]{0}', space=vmem, size = 0x4000, scoped, tag = 'input window, operand 2, single buffered']
    #allocation3 [shape = 's32[2]{0}', space=sflag, size = 0x8, scoped, tag = 'scoped memory for tpu_custom_call.1']
    #allocation4 [shape = 's32[2]{0}', space=sflag, size = 0x8, scoped, tag = 'scoped memory for tpu_custom_call.1']
    #allocation5 [shape = 'u8[16384]{0}', space=vmem, size = 0x4000, scoped, tag = 'input window, operand 5, single buffered']
    #allocation6 [shape = 's32[1]{0}', space=sflag, size = 0x4, scoped, tag = 'scoped memory for tpu_custom_call.1']
    #allocation7 [shape = 'u8[8192]{0}', space=vmem, size = 0x2000, scoped, tag = 'output window, operand 0']
    %14 = vsyncpa [#allocation3], 0
    %15 = vsyncpa [#allocation6], 0
    %16 = vsyncpa [#allocation4], 0
    %s17 = scalar_lea.sflag [#allocation4], 1
    %18 = vsyncpa %s17, 0
    loop: start=0, step=1, limit=4
    $region2: #{tpu_custom_call.1} parent=1 // loop_pre_header
      _
    $region3: #{tpu_custom_call.1} parent=1 // loop_header
      %s20 = sphi 0, %s24
      %p21 = scmp.ge.s32.totalorder %s20, 4
      %s27 = sphi 0, %s39
      %s28 = sphi 0, %s35
      %s29 = sphi 0, %s27
      %s30 = sphi 0, %s28
      %s31 = sphi 0, %s29
      %s32 = sphi 0, %s30
      %s44 = sphi 0, %s46
      %s47 = sphi 0, %s44
      %s48 = sphi 0, %s47
      %s64 = sphi 0, %s48
      %s70 = sphi 0, %s72
      %s73 = sphi 0, %s70
      %s74 = sphi 0, %s73
      %s90 = sphi 0, %s74
      %s94 = sphi 0, %s94
      %s96 = sphi 0, %s94
      %s97 = sphi 0, %s96
      %s111 = sphi 0, %s97
      %s115 = sphi 0, %s115
      %s117 = sphi 0, %s115
      %s118 = sphi 0, %s117
      %s132 = sphi 0, %s118
      %s136 = sphi 0, %s136
      %s138 = sphi 0, %s136
      %s139 = sphi 0, %s138
      %s153 = sphi 0, %s139
      %s157 = sphi 0, %s157
      %s159 = sphi 0, %s157
      %s160 = sphi 0, %s159
      %s174 = sphi 0, %s160
      %s178 = sphi 0, %s178
      %s180 = sphi 0, %s178
      %s181 = sphi 0, %s180
      %s195 = sphi 0, %s181
      %s199 = sphi 0, %s199
      %s201 = sphi 0, %s199
      %s202 = sphi 0, %s201
      %s216 = sphi 0, %s202
      %s220 = sphi 0, %s220
      %s222 = sphi 0, %s220
      %s223 = sphi 0, %s222
      %s237 = sphi 0, %s223
      %s245 = sphi 0, %s247
      %s248 = sphi 0, %s245
      %s249 = sphi 0, %s248
      %s265 = sphi 0, %s249
    $region4: #{tpu_custom_call.1} parent=1 // loop_header_branch
      %23 = sbr.rel (%p21) target = $region8
    $region5: #{tpu_custom_call.1} parent=1 // loop_body
      %s25 = ssub.s32 %s20, 1
      %s26 = ssub.s32 %s20, 2
      %s33 = sadd.s32 1, %s28
      %p34 = scmp.ge.s32.totalorder %s33, 1
      %s35 = scalar_select %p34, 0, %s33
      %s36 = sadd.s32 1, %s27
      %s37 = scalar_select %p34, %s36, %s27
      %p38 = scmp.ge.s32.totalorder %s37, 2
      %s39 = scalar_select %p38, 0, %s37
      %s40 = ssub.s32 %s27, %s39
      %s41 = ssub.s32 %s28, %s35
      %s42 = sor.u32 %s40, %s41
      %p43 = scmp.eq.s32.totalorder %s42, 0
      %s45 = sadd.s32 %s44, 1
      %s46 = scalar_select %p43, %s44, %s45
      %p49 = pneg %p43
      %p50 = scmp.eq.s32.totalorder %s20, 1
      %p51 = por %p49, %p50
      %p52 = scmp.ne.s32.totalorder %s44, %s47
      %p53 = scmp.eq.s32.totalorder %s20, 0
      %p54 = por %p52, %p53
      %p55 = scmp.ne.s32.totalorder %s44, %s47
      %p56 = scmp.eq.s32.totalorder %s25, 1
      %p57 = por %p55, %p56
      %p58 = scmp.ne.s32.totalorder %s47, %s48
      %p59 = scmp.eq.s32.totalorder %s25, 0
      %p60 = por %p58, %p59
      %p61 = scmp.ne.s32.totalorder %s47, %s48
      %p62 = scmp.eq.s32.totalorder %s26, 1
      %p63 = por %p61, %p62
      %p65 = scmp.ne.s32.totalorder %s48, %s64
      %p66 = scmp.eq.s32.totalorder %s26, 0
      %p67 = por %p65, %p66
      %s68 = ssub.s32 %s27, %s39
      %p69 = scmp.eq.s32.totalorder %s68, 0
      %s71 = sadd.s32 %s70, 1
      %s72 = scalar_select %p69, %s70, %s71
      %p75 = pneg %p69
      %p76 = scmp.eq.s32.totalorder %s20, 1
      %p77 = por %p75, %p76
      %p78 = scmp.ne.s32.totalorder %s70, %s73
      %p79 = scmp.eq.s32.totalorder %s20, 0
      %p80 = por %p78, %p79
      %p81 = scmp.ne.s32.totalorder %s70, %s73
      %p82 = scmp.eq.s32.totalorder %s25, 1
      %p83 = por %p81, %p82
      %p84 = scmp.ne.s32.totalorder %s73, %s74
      %p85 = scmp.eq.s32.totalorder %s25, 0
      %p86 = por %p84, %p85
      %p87 = scmp.ne.s32.totalorder %s73, %s74
      %p88 = scmp.eq.s32.totalorder %s26, 1
      %p89 = por %p87, %p88
      %p91 = scmp.ne.s32.totalorder %s74, %s90
      %p92 = scmp.eq.s32.totalorder %s26, 0
      %p93 = por %p91, %p92
      %s95 = sadd.s32 %s94, 1
      %p98 = scmp.eq.s32.totalorder %s20, 1
      %p99 = scmp.ne.s32.totalorder %s94, %s96
      %p100 = scmp.eq.s32.totalorder %s20, 0
      %p101 = por %p99, %p100
      %p102 = scmp.ne.s32.totalorder %s94, %s96
      %p103 = scmp.eq.s32.totalorder %s25, 1
      %p104 = por %p102, %p103
      %p105 = scmp.ne.s32.totalorder %s96, %s97
      %p106 = scmp.eq.s32.totalorder %s25, 0
      %p107 = por %p105, %p106
      %p108 = scmp.ne.s32.totalorder %s96, %s97
      %p109 = scmp.eq.s32.totalorder %s26, 1
      %p110 = por %p108, %p109
      %p112 = scmp.ne.s32.totalorder %s97, %s111
      %p113 = scmp.eq.s32.totalorder %s26, 0
      %p114 = por %p112, %p113
      %s116 = sadd.s32 %s115, 1
      %p119 = scmp.eq.s32.totalorder %s20, 1
      %p120 = scmp.ne.s32.totalorder %s115, %s117
      %p121 = scmp.eq.s32.totalorder %s20, 0
      %p122 = por %p120, %p121
      %p123 = scmp.ne.s32.totalorder %s115, %s117
      %p124 = scmp.eq.s32.totalorder %s25, 1
      %p125 = por %p123, %p124
      %p126 = scmp.ne.s32.totalorder %s117, %s118
      %p127 = scmp.eq.s32.totalorder %s25, 0
      %p128 = por %p126, %p127
      %p129 = scmp.ne.s32.totalorder %s117, %s118
      %p130 = scmp.eq.s32.totalorder %s26, 1
      %p131 = por %p129, %p130
      %p133 = scmp.ne.s32.totalorder %s118, %s132
      %p134 = scmp.eq.s32.totalorder %s26, 0
      %p135 = por %p133, %p134
      %s137 = sadd.s32 %s136, 1
      %p140 = scmp.eq.s32.totalorder %s20, 1
      %p141 = scmp.ne.s32.totalorder %s136, %s138
      %p142 = scmp.eq.s32.totalorder %s20, 0
      %p143 = por %p141, %p142
      %p144 = scmp.ne.s32.totalorder %s136, %s138
      %p145 = scmp.eq.s32.totalorder %s25, 1
      %p146 = por %p144, %p145
      %p147 = scmp.ne.s32.totalorder %s138, %s139
      %p148 = scmp.eq.s32.totalorder %s25, 0
      %p149 = por %p147, %p148
      %p150 = scmp.ne.s32.totalorder %s138, %s139
      %p151 = scmp.eq.s32.totalorder %s26, 1
      %p152 = por %p150, %p151
      %p154 = scmp.ne.s32.totalorder %s139, %s153
      %p155 = scmp.eq.s32.totalorder %s26, 0
      %p156 = por %p154, %p155
      %s158 = sadd.s32 %s157, 1
      %p161 = scmp.eq.s32.totalorder %s20, 1
      %p162 = scmp.ne.s32.totalorder %s157, %s159
      %p163 = scmp.eq.s32.totalorder %s20, 0
      %p164 = por %p162, %p163
      %p165 = scmp.ne.s32.totalorder %s157, %s159
      %p166 = scmp.eq.s32.totalorder %s25, 1
      %p167 = por %p165, %p166
      %p168 = scmp.ne.s32.totalorder %s159, %s160
      %p169 = scmp.eq.s32.totalorder %s25, 0
      %p170 = por %p168, %p169
      %p171 = scmp.ne.s32.totalorder %s159, %s160
      %p172 = scmp.eq.s32.totalorder %s26, 1
      %p173 = por %p171, %p172
      %p175 = scmp.ne.s32.totalorder %s160, %s174
      %p176 = scmp.eq.s32.totalorder %s26, 0
      %p177 = por %p175, %p176
      %s179 = sadd.s32 %s178, 1
      %p182 = scmp.eq.s32.totalorder %s20, 1
      %p183 = scmp.ne.s32.totalorder %s178, %s180
      %p184 = scmp.eq.s32.totalorder %s20, 0
      %p185 = por %p183, %p184
      %p186 = scmp.ne.s32.totalorder %s178, %s180
      %p187 = scmp.eq.s32.totalorder %s25, 1
      %p188 = por %p186, %p187
      %p189 = scmp.ne.s32.totalorder %s180, %s181
      %p190 = scmp.eq.s32.totalorder %s25, 0
      %p191 = por %p189, %p190
      %p192 = scmp.ne.s32.totalorder %s180, %s181
      %p193 = scmp.eq.s32.totalorder %s26, 1
      %p194 = por %p192, %p193
      %p196 = scmp.ne.s32.totalorder %s181, %s195
      %p197 = scmp.eq.s32.totalorder %s26, 0
      %p198 = por %p196, %p197
      %s200 = sadd.s32 %s199, 1
      %p203 = scmp.eq.s32.totalorder %s20, 1
      %p204 = scmp.ne.s32.totalorder %s199, %s201
      %p205 = scmp.eq.s32.totalorder %s20, 0
      %p206 = por %p204, %p205
      %p207 = scmp.ne.s32.totalorder %s199, %s201
      %p208 = scmp.eq.s32.totalorder %s25, 1
      %p209 = por %p207, %p208
      %p210 = scmp.ne.s32.totalorder %s201, %s202
      %p211 = scmp.eq.s32.totalorder %s25, 0
      %p212 = por %p210, %p211
      %p213 = scmp.ne.s32.totalorder %s201, %s202
      %p214 = scmp.eq.s32.totalorder %s26, 1
      %p215 = por %p213, %p214
      %p217 = scmp.ne.s32.totalorder %s202, %s216
      %p218 = scmp.eq.s32.totalorder %s26, 0
      %p219 = por %p217, %p218
      %s221 = sadd.s32 %s220, 1
      %p224 = scmp.eq.s32.totalorder %s20, 1
      %p225 = scmp.ne.s32.totalorder %s220, %s222
      %p226 = scmp.eq.s32.totalorder %s20, 0
      %p227 = por %p225, %p226
      %p228 = scmp.ne.s32.totalorder %s220, %s222
      %p229 = scmp.eq.s32.totalorder %s25, 1
      %p230 = por %p228, %p229
      %p231 = scmp.ne.s32.totalorder %s222, %s223
      %p232 = scmp.eq.s32.totalorder %s25, 0
      %p233 = por %p231, %p232
      %p234 = scmp.ne.s32.totalorder %s222, %s223
      %p235 = scmp.eq.s32.totalorder %s26, 1
      %p236 = por %p234, %p235
      %p238 = scmp.ne.s32.totalorder %s223, %s237
      %p239 = scmp.eq.s32.totalorder %s26, 0
      %p240 = por %p238, %p239
      %s241 = ssub.s32 %s27, %s39
      %s242 = ssub.s32 %s28, %s35
      %s243 = sor.u32 %s241, %s242
      %p244 = scmp.eq.s32.totalorder %s243, 0
      %s246 = sadd.s32 %s245, 1
      %s247 = scalar_select %p244, %s245, %s246
      %p250 = pneg %p244
      %p251 = scmp.eq.s32.totalorder %s20, 1
      %p252 = por %p250, %p251
      %p253 = scmp.ne.s32.totalorder %s245, %s248
      %p254 = scmp.eq.s32.totalorder %s20, 0
      %p255 = por %p253, %p254
      %p256 = scmp.ne.s32.totalorder %s245, %s248
      %p257 = scmp.eq.s32.totalorder %s25, 1
      %p258 = por %p256, %p257
      %p259 = scmp.ne.s32.totalorder %s248, %s249
      %p260 = scmp.eq.s32.totalorder %s25, 0
      %p261 = por %p259, %p260
      %p262 = scmp.ne.s32.totalorder %s248, %s249
      %p263 = scmp.eq.s32.totalorder %s26, 1
      %p264 = por %p262, %p263
      %p266 = scmp.ne.s32.totalorder %s249, %s265
      %p267 = scmp.eq.s32.totalorder %s26, 0
      %p268 = por %p266, %p267
      %p269 = scmp.le.s32.totalorder 1, %s20
      %p270 = scmp.lt.s32.totalorder %s20, 3
      %p271 = pnand %p269, %p270
      %p272 = pneg %p271
      // Predicated region
      $region9: #{tpu_custom_call.1} parent=5 // pred_check
        _
      $region10: #{tpu_custom_call.1} parent=5 // pred_check_branch
        %274 = sbr.rel (%p271) target = $region12
      $region11: #{tpu_custom_call.1} parent=5 // pred_region
        %s275 = ssub.s32 %s20, 1
        // Predicated region
        $region13: #{tpu_custom_call.1} parent=11 // pred_check
          %p276 = pneg %p107
        $region14: #{tpu_custom_call.1} parent=11 // pred_check_branch
          %278 = sbr.rel (%p276) target = $region16
        $region15: #{tpu_custom_call.1} parent=11 // pred_region
          %s280 = ssub.s32 512, 512
          %281 = vsyncadd [#allocation3], %s280
          %s282 = sshll.u32 [#allocation2], 4
          %s283 = int_to_ptr.vmem [resolvable:$true] %s282
          %288 = dma.hbm_to_vmem [thread:$0]  %s2, 512, %s283, [#allocation3], 128, 128, 8
        $region16: #{tpu_custom_call.1} parent=11 // pred_fallthru
          _
        // Predicated region
        $region17: #{tpu_custom_call.1} parent=11 // pred_check
          %p289 = pneg %p128
        $region18: #{tpu_custom_call.1} parent=11 // pred_check_branch
          %291 = sbr.rel (%p289) target = $region20
        $region19: #{tpu_custom_call.1} parent=11 // pred_region
          _
        $region20: #{tpu_custom_call.1} parent=11 // pred_fallthru
          _
        // Predicated region
        $region21: #{tpu_custom_call.1} parent=11 // pred_check
          %p292 = pneg %p149
        $region22: #{tpu_custom_call.1} parent=11 // pred_check_branch
          %294 = sbr.rel (%p292) target = $region24
        $region23: #{tpu_custom_call.1} parent=11 // pred_region
          _
        $region24: #{tpu_custom_call.1} parent=11 // pred_fallthru
          _
        // Predicated region
        $region25: #{tpu_custom_call.1} parent=11 // pred_check
          %p295 = pneg %p170
        $region26: #{tpu_custom_call.1} parent=11 // pred_check_branch
          %297 = sbr.rel (%p295) target = $region28
        $region27: #{tpu_custom_call.1} parent=11 // pred_region
          %s299 = ssub.s32 512, 512
          %300 = vsyncadd [#allocation6], %s299
          %s301 = sshll.u32 [#allocation5], 4
          %s302 = int_to_ptr.vmem [resolvable:$true] %s301
          %307 = dma.hbm_to_vmem [thread:$0]  %s5, 512, %s302, [#allocation6], 128, 128, 8
        $region28: #{tpu_custom_call.1} parent=11 // pred_fallthru
          _
        // Predicated region
        $region29: #{tpu_custom_call.1} parent=11 // pred_check
          %p308 = pneg %p191
        $region30: #{tpu_custom_call.1} parent=11 // pred_check_branch
          %310 = sbr.rel (%p308) target = $region32
        $region31: #{tpu_custom_call.1} parent=11 // pred_region
          _
        $region32: #{tpu_custom_call.1} parent=11 // pred_fallthru
          _
        // Predicated region
        $region33: #{tpu_custom_call.1} parent=11 // pred_check
          %p311 = pneg %p212
        $region34: #{tpu_custom_call.1} parent=11 // pred_check_branch
          %313 = sbr.rel (%p311) target = $region36
        $region35: #{tpu_custom_call.1} parent=11 // pred_region
          _
        $region36: #{tpu_custom_call.1} parent=11 // pred_fallthru
          _
        // Predicated region
        $region37: #{tpu_custom_call.1} parent=11 // pred_check
          %p314 = pneg %p233
        $region38: #{tpu_custom_call.1} parent=11 // pred_check_branch
          %316 = sbr.rel (%p314) target = $region40
        $region39: #{tpu_custom_call.1} parent=11 // pred_region
          _
        $region40: #{tpu_custom_call.1} parent=11 // pred_fallthru
          _
      $region12: #{tpu_custom_call.1} parent=5 // pred_fallthru
        _
      %p317 = scmp.lt.s32.totalorder %s20, 2
      // Predicated region
      $region41: #{tpu_custom_call.1} parent=5 // pred_check
        %p318 = pneg %p317
      $region42: #{tpu_custom_call.1} parent=5 // pred_check_branch
        %320 = sbr.rel (%p318) target = $region44
      $region43: #{tpu_custom_call.1} parent=5 // pred_region
        // Predicated region
        $region45: #{tpu_custom_call.1} parent=43 // pred_check
          %p321 = pneg %p54
        $region46: #{tpu_custom_call.1} parent=43 // pred_check_branch
          %323 = sbr.rel (%p321) target = $region48
        $region47: #{tpu_custom_call.1} parent=43 // pred_region
          %s324 = smul.u32 2, %s28
          %p325 = scmp.lt.s32.totalorder %s27, 1
          %s326 = scalar_select %p325, %s27, 1
          %p327 = scmp.lt.s32.totalorder %s324, 1
          %s328 = scalar_select %p327, %s324, 1
          %s329 = smul.addr %s326, 8
          %s330 = sadd.s32 %s328, %s329
          %s331 = smul.addr %s330, 8
          %s332 = scalar_lea.vmem %s0, %s331
          %s333 = smul.u32 2, %s28
        $region48: #{tpu_custom_call.1} parent=43 // pred_fallthru
          _
        // Predicated region
        $region49: #{tpu_custom_call.1} parent=43 // pred_check
          %p334 = pneg %p80
        $region50: #{tpu_custom_call.1} parent=43 // pred_check_branch
          %336 = sbr.rel (%p334) target = $region52
        $region51: #{tpu_custom_call.1} parent=43 // pred_region
          %p337 = scmp.lt.s32.totalorder %s27, 1
          %s338 = scalar_select %p337, %s27, 1
          %s339 = smul.addr %s338, 8
          %s340 = scalar_lea.vmem %s1, %s339
        $region52: #{tpu_custom_call.1} parent=43 // pred_fallthru
          _
      $region44: #{tpu_custom_call.1} parent=5 // pred_fallthru
        _
      %p341 = scmp.le.s32.totalorder 1, %s20
      %p342 = scmp.lt.s32.totalorder %s20, 3
      %p343 = pnand %p341, %p342
      %p344 = pneg %p343
      // Predicated region
      $region53: #{tpu_custom_call.1} parent=5 // pred_check
        _
      $region54: #{tpu_custom_call.1} parent=5 // pred_check_branch
        %346 = sbr.rel (%p343) target = $region56
      $region55: #{tpu_custom_call.1} parent=5 // pred_region
        %s347 = ssub.s32 %s20, 1
        // Predicated region
        $region57: #{tpu_custom_call.1} parent=55 // pred_check
          %p348 = pneg %p107
        $region58: #{tpu_custom_call.1} parent=55 // pred_check_branch
          %350 = sbr.rel (%p348) target = $region60
        $region59: #{tpu_custom_call.1} parent=55 // pred_region
          %351 = dma.done [#allocation3], 512
        $region60: #{tpu_custom_call.1} parent=55 // pred_fallthru
          _
        // Predicated region
        $region61: #{tpu_custom_call.1} parent=55 // pred_check
          %p352 = pneg %p170
        $region62: #{tpu_custom_call.1} parent=55 // pred_check_branch
          %354 = sbr.rel (%p352) target = $region64
        $region63: #{tpu_custom_call.1} parent=55 // pred_region
          %355 = dma.done [#allocation6], 512
        $region64: #{tpu_custom_call.1} parent=55 // pred_fallthru
          _
        %s356 = smul.u32 2, %s30
        %p357 = scmp.lt.s32.totalorder %s29, 1
        %s358 = scalar_select %p357, %s29, 1
        %p359 = scmp.lt.s32.totalorder %s356, 1
        %s360 = scalar_select %p359, %s356, 1
        %s361 = smul.addr %s358, 8
        %s362 = sadd.s32 %s360, %s361
        %s363 = smul.addr %s362, 8
        %s364 = scalar_lea.vmem %s0, %s363
        %p365 = pneg %p60
        %p366 = pneg %p57
        %p367 = scmp.lt.s32.totalorder %s29, 1
        %s368 = scalar_select %p367, %s29, 1
        %s369 = smul.addr %s368, 8
        %s370 = scalar_lea.vmem %s1, %s369
        %p371 = pneg %p86
        %p372 = pneg %p83
        %p373 = pneg %p107
        %p374 = pneg %p104
        %p375 = pneg %p128
        %p376 = pneg %p125
        %p377 = pneg %p149
        %p378 = pneg %p146
        %p379 = pneg %p170
        %p380 = pneg %p167
        %p381 = pneg %p191
        %p382 = pneg %p188
        %p383 = pneg %p212
        %p384 = pneg %p209
        %p385 = pneg %p233
        %p386 = pneg %p230
        %p387 = pneg %p261
        %p388 = pneg %p258
        %s389 = sand.u32 %s248, 1
        %s390 = scalar_lea.sflag [#allocation4], %s389
        %s391 = sand.u32 %s248, 1
        %s392 = smul.addr %s391, 8
        %s393 = scalar_lea.vmem [#allocation7], %s392
        %s394 = smul.u32 2, %s30
        %p395 = scmp.lt.s32.totalorder %s29, 1
        %s396 = scalar_select %p395, %s29, 1
        %p397 = scmp.lt.s32.totalorder %s394, 1
        %s398 = scalar_select %p397, %s394, 1
        %s399 = smul.addr %s396, 8
        %s400 = sadd.s32 %s398, %s399
        %s401 = smul.addr %s400, 8
        %s402 = scalar_lea.vmem %s0, %s401
        %s403 = smul.u32 2, %s30
        %p404 = scmp.lt.s32.totalorder %s29, 1
        %s405 = scalar_select %p404, %s29, 1
        %s406 = smul.addr %s405, 8
        %s407 = scalar_lea.vmem %s1, %s406
        %s408 = smul.u32 2, %s30
        %v409 = vld [vmem:[%s402] sm:$0xff]
        %v410 = vld [vmem:[%s402 + $0x8] sm:$0xff]
        %v411 = vld [vmem:[%s402 + $0x10] sm:$0xff]
        %v412 = vld [vmem:[%s402 + $0x18] sm:$0xff]
        %v413 = vld [vmem:[%s402 + $0x20] sm:$0xff]
        %v414 = vld [vmem:[%s402 + $0x28] sm:$0xff]
        %v415 = vld [vmem:[%s402 + $0x30] sm:$0xff]
        %v416 = vld [vmem:[%s402 + $0x38] sm:$0xff]
        %v417 = vld [vmem:[%s407] sm:$0x3f]
        %v418 = vld [vmem:[%s3] sm:$0xff]
        %v419 = vld [vmem:[%s3 + $0x8] sm:$0xff]
        %v420 = vld [vmem:[%s3 + $0x10] sm:$0xff]
        %v421 = vld [vmem:[%s3 + $0x18] sm:$0xff]
        %v422 = vld [vmem:[%s4] sm:$0xff]
        %v423 = vld [vmem:[%s4 + $0x8] sm:$0xff]
        %v424 = vld [vmem:[%s4 + $0x10] sm:$0xff]
        %v425 = vld [vmem:[%s4 + $0x18] sm:$0xff]
        %vm426 = vcmask 48128
        %v428 = vsel %vm426, %v418, 0
        %v431 = vsel %vm426, %v419, 0
        %v434 = vsel %vm426, %v420, 0
        %v437 = vsel %vm426, %v421, 0
        %vm439 = vcmask 1045504
        %v441 = vsel %vm439, %v417, 0
        %443 = vmatprep.subr.mxu0 0.0
        %444 = vmatpush1.msra.mxu0 0.0
        %445 = vmatprep.subr.mxu0 0.0
        %446 = vmatpush1.msra.mxu0 0.0
        %447 = vmatprep.subr.mxu0 0.0
        %448 = vmatpush1.msra.mxu0 0.0
        %449 = vmatprep.subr.mxu0 0.0
        %450 = vmatpush1.msra.mxu0 0.0
        %451 = vmatprep.subr.mxu0 0.0
        %452 = vmatpush1.msra.mxu0 0.0
        %453 = vmatprep.subr.mxu0 0.0
        %454 = vmatpush1.msra.mxu0 0.0
        %455 = vmatprep.subr.mxu0 0.0
        %456 = vmatpush1.msra.mxu0 0.0
        %457 = vmatprep.subr.mxu0 0.0
        %458 = vmatpush1.msra.mxu0 0.0
        %459 = vmatprep.subr.mxu0 0.0
        %460 = vmatpush1.msra.mxu0 0.0
        %461 = vmatprep.subr.mxu0 0.0
        %462 = vmatpush1.msra.mxu0 0.0
        %463 = vmatprep.subr.mxu0 0.0
        %464 = vmatpush1.msra.mxu0 0.0
        %465 = vmatprep.subr.mxu0 0.0
        %466 = vmatpush1.msra.mxu0 0.0
        %467 = vmatprep.subr.mxu0 0.0
        %468 = vmatpush1.msra.mxu0 0.0
        %469 = vmatprep.subr.mxu0 0.0
        %470 = vmatpush1.msra.mxu0 0.0
        %471 = vmatprep.subr.mxu0 0.0
        %472 = vmatpush1.msra.mxu0 0.0
        %473 = vmatprep.subr.mxu0 0.0
        %474 = vmatpush1.msra.mxu0 %v441
        %475 = vmatprep.subr.mxu0 0.0
        %476 = vmatpush2.msra.mxu0 0.0
        %477 = vmatprep.subr.mxu0 0.0
        %478 = vmatpush2.msra.mxu0 0.0
        %479 = vmatprep.subr.mxu0 0.0
        %480 = vmatpush2.msra.mxu0 0.0
        %481 = vmatprep.subr.mxu0 0.0
        %482 = vmatpush2.msra.mxu0 0.0
        %483 = vmatprep.subr.mxu0 0.0
        %484 = vmatpush2.msra.mxu0 0.0
        %485 = vmatprep.subr.mxu0 0.0
        %486 = vmatpush2.msra.mxu0 0.0
        %487 = vmatprep.subr.mxu0 0.0
        %488 = vmatpush2.msra.mxu0 0.0
        %489 = vmatprep.subr.mxu0 0.0
        %490 = vmatpush2.msra.mxu0 0.0
        %491 = vmatprep.subr.mxu0 0.0
        %492 = vmatpush2.msra.mxu0 0.0
        %493 = vmatprep.subr.mxu0 0.0
        %494 = vmatpush2.msra.mxu0 0.0
        %495 = vmatprep.subr.mxu0 0.0
        %496 = vmatpush2.msra.mxu0 0.0
        %497 = vmatprep.subr.mxu0 0.0
        %498 = vmatpush2.msra.mxu0 0.0
        %499 = vmatprep.subr.mxu0 0.0
        %500 = vmatpush2.msra.mxu0 0.0
        %501 = vmatprep.subr.mxu0 0.0
        %502 = vmatpush2.msra.mxu0 0.0
        %503 = vmatprep.subr.mxu0 0.0
        %504 = vmatpush2.msra.mxu0 0.0
        %505 = vmatprep.subr.mxu0 0.0
        %506 = vmatpush2.msra.mxu0 0.0
        %507 = vmatprep.mubr.f32.mxu0 0.0
        %508 = vmatmul.mubr.f32.gmra.mxu0 %v428
        %v509 = vpop.f32.mrf.mxu0
        %v510 = vadd.f32 %v422, %v509
        %v511 = vpop.f32.mrf.mxu0
        %512 = vmatprep.mubr.f32.mxu0 0.0
        %513 = vmatmul.mubr.f32.gmra.mxu0 %v431
        %v514 = vpop.f32.mrf.mxu0
        %v515 = vadd.f32 %v423, %v514
        %v516 = vpop.f32.mrf.mxu0
        %517 = vmatprep.mubr.f32.mxu0 0.0
        %518 = vmatmul.mubr.f32.gmra.mxu0 %v434
        %v519 = vpop.f32.mrf.mxu0
        %v520 = vadd.f32 %v424, %v519
        %v521 = vpop.f32.mrf.mxu0
        %522 = vmatprep.mubr.f32.mxu0 0.0
        %523 = vmatmul.mubr.f32.gmra.mxu0 %v437
        %v524 = vpop.f32.mrf.mxu0
        %v525 = vadd.f32 %v425, %v524
        %v526 = vpop.f32.mrf.mxu0
        %527 = vdwg.mxu0
        %v528 = vld [vmem:[#allocation2] sm:$0xff]
        %v529 = vld [vmem:[#allocation2 + $0x8] sm:$0xff]
        %v530 = vld [vmem:[#allocation2 + $0x10] sm:$0xff]
        %v531 = vld [vmem:[#allocation2 + $0x18] sm:$0xff]
        %533 = vset.pattern.permute.xlu0 0
        %534 = vperm.xlu0 %533, %v510
        %v535 = vpop.permute.xlu0 %534
        %538 = vset.pattern.permute.xlu0 0
        %539 = vperm.xlu0 %538, %v515
        %v540 = vpop.permute.xlu0 %539
        %543 = vset.pattern.permute.xlu0 0
        %544 = vperm.xlu0 %543, %v520
        %v545 = vpop.permute.xlu0 %544
        %548 = vset.pattern.permute.xlu0 0
        %549 = vperm.xlu0 %548, %v525
        %v550 = vpop.permute.xlu0 %549
        %vm552 = vcmask 261120
        %v554 = vsel %vm552, %v528, 0
        %v557 = vsel %vm552, %v529, 0
        %v560 = vsel %vm552, %v530, 0
        %v563 = vsel %vm552, %v531, 0
        %565 = vmatprep.subr.mxu0 0.0
        %566 = vmatpush1.msra.mxu0 0.0
        %567 = vmatprep.subr.mxu0 0.0
        %568 = vmatpush1.msra.mxu0 0.0
        %569 = vmatprep.subr.mxu0 0.0
        %570 = vmatpush1.msra.mxu0 0.0
        %571 = vmatprep.subr.mxu0 0.0
        %572 = vmatpush1.msra.mxu0 0.0
        %573 = vmatprep.subr.mxu0 0.0
        %574 = vmatpush1.msra.mxu0 0.0
        %575 = vmatprep.subr.mxu0 0.0
        %576 = vmatpush1.msra.mxu0 0.0
        %577 = vmatprep.subr.mxu0 0.0
        %578 = vmatpush1.msra.mxu0 0.0
        %579 = vmatprep.subr.mxu0 0.0
        %580 = vmatpush1.msra.mxu0 0.0
        %581 = vmatprep.subr.mxu0 0.0
        %582 = vmatpush1.msra.mxu0 0.0
        %583 = vmatprep.subr.mxu0 0.0
        %584 = vmatpush1.msra.mxu0 0.0
        %585 = vmatprep.subr.mxu0 0.0
        %586 = vmatpush1.msra.mxu0 0.0
        %587 = vmatprep.subr.mxu0 0.0
        %588 = vmatpush1.msra.mxu0 0.0
        %589 = vmatprep.subr.mxu0 %v416
        %590 = vmatpush1.msra.mxu0 %v415
        %591 = vmatprep.subr.mxu0 %v414
        %592 = vmatpush1.msra.mxu0 %v413
        %593 = vmatprep.subr.mxu0 %v412
        %594 = vmatpush1.msra.mxu0 %v411
        %595 = vmatprep.subr.mxu0 %v410
        %596 = vmatpush1.msra.mxu0 %v409
        %597 = vmatprep.subr.mxu0 0.0
        %598 = vmatpush2.msra.mxu0 0.0
        %599 = vmatprep.subr.mxu0 0.0
        %600 = vmatpush2.msra.mxu0 0.0
        %601 = vmatprep.subr.mxu0 0.0
        %602 = vmatpush2.msra.mxu0 0.0
        %603 = vmatprep.subr.mxu0 0.0
        %604 = vmatpush2.msra.mxu0 0.0
        %605 = vmatprep.subr.mxu0 0.0
        %606 = vmatpush2.msra.mxu0 0.0
        %607 = vmatprep.subr.mxu0 0.0
        %608 = vmatpush2.msra.mxu0 0.0
        %609 = vmatprep.subr.mxu0 0.0
        %610 = vmatpush2.msra.mxu0 0.0
        %611 = vmatprep.subr.mxu0 0.0
        %612 = vmatpush2.msra.mxu0 0.0
        %613 = vmatprep.subr.mxu0 0.0
        %614 = vmatpush2.msra.mxu0 0.0
        %615 = vmatprep.subr.mxu0 0.0
        %616 = vmatpush2.msra.mxu0 0.0
        %617 = vmatprep.subr.mxu0 0.0
        %618 = vmatpush2.msra.mxu0 0.0
        %619 = vmatprep.subr.mxu0 0.0
        %620 = vmatpush2.msra.mxu0 0.0
        %621 = vmatprep.subr.mxu0 0.0
        %622 = vmatpush2.msra.mxu0 0.0
        %623 = vmatprep.subr.mxu0 0.0
        %624 = vmatpush2.msra.mxu0 0.0
        %625 = vmatprep.subr.mxu0 0.0
        %626 = vmatpush2.msra.mxu0 0.0
        %627 = vmatprep.subr.mxu0 0.0
        %628 = vmatpush2.msra.mxu0 0.0
        %629 = vmatprep.mubr.f32.mxu0 0.0
        %630 = vmatmul.mubr.f32.gmra.mxu0 %v554
        %v631 = vpop.f32.mrf.mxu0
        %v632 = vadd.f32 %v535, %v631
        %v633 = vpop.f32.mrf.mxu0
        %v634 = vadd.f32 %v535, %v633
        %635 = vmatprep.mubr.f32.mxu0 0.0
        %636 = vmatmul.mubr.f32.gmra.mxu0 %v557
        %v637 = vpop.f32.mrf.mxu0
        %v638 = vadd.f32 %v540, %v637
        %v639 = vpop.f32.mrf.mxu0
        %v640 = vadd.f32 %v540, %v639
        %641 = vmatprep.mubr.f32.mxu0 0.0
        %642 = vmatmul.mubr.f32.gmra.mxu0 %v560
        %v643 = vpop.f32.mrf.mxu0
        %v644 = vadd.f32 %v545, %v643
        %v645 = vpop.f32.mrf.mxu0
        %v646 = vadd.f32 %v545, %v645
        %647 = vmatprep.mubr.f32.mxu0 0.0
        %648 = vmatmul.mubr.f32.gmra.mxu0 %v563
        %v649 = vpop.f32.mrf.mxu0
        %v650 = vadd.f32 %v550, %v649
        %v651 = vpop.f32.mrf.mxu0
        %v652 = vadd.f32 %v550, %v651
        %653 = vdwg.mxu0
        %v654 = vmax.f32 %v632, 0.0
        %v655 = vmax.f32 %v634, 0.0
        %v656 = vmax.f32 %v638, 0.0
        %v657 = vmax.f32 %v640, 0.0
        %v658 = vmax.f32 %v644, 0.0
        %v659 = vmax.f32 %v646, 0.0
        %v660 = vmax.f32 %v650, 0.0
        %v661 = vmax.f32 %v652, 0.0
        %v662 = vld [vmem:[#allocation5] sm:$0xff]
        %v663 = vld [vmem:[#allocation5 + $0x8] sm:$0xff]
        %v664 = vld [vmem:[#allocation5 + $0x10] sm:$0xff]
        %v665 = vld [vmem:[#allocation5 + $0x18] sm:$0xff]
        %v666 = vld [vmem:[%s6] sm:$0xff]
        %v667 = vld [vmem:[%s6 + $0x8] sm:$0xff]
        %v668 = vld [vmem:[%s6 + $0x10] sm:$0xff]
        %v669 = vld [vmem:[%s6 + $0x18] sm:$0xff]
        %671 = vset.pattern.permute.xlu0 0
        %672 = vperm.xlu0 %671, %v666
        %v673 = vpop.permute.xlu0 %672
        %676 = vset.pattern.permute.xlu0 0
        %677 = vperm.xlu0 %676, %v667
        %v678 = vpop.permute.xlu0 %677
        %681 = vset.pattern.permute.xlu0 0
        %682 = vperm.xlu0 %681, %v668
        %v683 = vpop.permute.xlu0 %682
        %686 = vset.pattern.permute.xlu0 0
        %687 = vperm.xlu0 %686, %v669
        %v688 = vpop.permute.xlu0 %687
        %v691 = vsel %vm552, %v662, 0
        %v694 = vsel %vm552, %v663, 0
        %v697 = vsel %vm552, %v664, 0
        %v700 = vsel %vm552, %v665, 0
        %702 = vmatprep.subr.mxu0 0.0
        %703 = vmatpush1.msra.mxu0 0.0
        %704 = vmatprep.subr.mxu0 0.0
        %705 = vmatpush1.msra.mxu0 0.0
        %706 = vmatprep.subr.mxu0 0.0
        %707 = vmatpush1.msra.mxu0 0.0
        %708 = vmatprep.subr.mxu0 0.0
        %709 = vmatpush1.msra.mxu0 0.0
        %710 = vmatprep.subr.mxu0 0.0
        %711 = vmatpush1.msra.mxu0 0.0
        %712 = vmatprep.subr.mxu0 0.0
        %713 = vmatpush1.msra.mxu0 0.0
        %714 = vmatprep.subr.mxu0 0.0
        %715 = vmatpush1.msra.mxu0 0.0
        %716 = vmatprep.subr.mxu0 0.0
        %717 = vmatpush1.msra.mxu0 0.0
        %718 = vmatprep.subr.mxu0 0.0
        %719 = vmatpush1.msra.mxu0 0.0
        %720 = vmatprep.subr.mxu0 0.0
        %721 = vmatpush1.msra.mxu0 0.0
        %722 = vmatprep.subr.mxu0 0.0
        %723 = vmatpush1.msra.mxu0 0.0
        %724 = vmatprep.subr.mxu0 0.0
        %725 = vmatpush1.msra.mxu0 0.0
        %726 = vmatprep.subr.mxu0 %v661
        %727 = vmatpush1.msra.mxu0 %v660
        %728 = vmatprep.subr.mxu0 %v659
        %729 = vmatpush1.msra.mxu0 %v658
        %730 = vmatprep.subr.mxu0 %v657
        %731 = vmatpush1.msra.mxu0 %v656
        %732 = vmatprep.subr.mxu0 %v655
        %733 = vmatpush1.msra.mxu0 %v654
        %734 = vmatprep.subr.mxu0 0.0
        %735 = vmatpush2.msra.mxu0 0.0
        %736 = vmatprep.subr.mxu0 0.0
        %737 = vmatpush2.msra.mxu0 0.0
        %738 = vmatprep.subr.mxu0 0.0
        %739 = vmatpush2.msra.mxu0 0.0
        %740 = vmatprep.subr.mxu0 0.0
        %741 = vmatpush2.msra.mxu0 0.0
        %742 = vmatprep.subr.mxu0 0.0
        %743 = vmatpush2.msra.mxu0 0.0
        %744 = vmatprep.subr.mxu0 0.0
        %745 = vmatpush2.msra.mxu0 0.0
        %746 = vmatprep.subr.mxu0 0.0
        %747 = vmatpush2.msra.mxu0 0.0
        %748 = vmatprep.subr.mxu0 0.0
        %749 = vmatpush2.msra.mxu0 0.0
        %750 = vmatprep.subr.mxu0 0.0
        %751 = vmatpush2.msra.mxu0 0.0
        %752 = vmatprep.subr.mxu0 0.0
        %753 = vmatpush2.msra.mxu0 0.0
        %754 = vmatprep.subr.mxu0 0.0
        %755 = vmatpush2.msra.mxu0 0.0
        %756 = vmatprep.subr.mxu0 0.0
        %757 = vmatpush2.msra.mxu0 0.0
        %758 = vmatprep.subr.mxu0 0.0
        %759 = vmatpush2.msra.mxu0 0.0
        %760 = vmatprep.subr.mxu0 0.0
        %761 = vmatpush2.msra.mxu0 0.0
        %762 = vmatprep.subr.mxu0 0.0
        %763 = vmatpush2.msra.mxu0 0.0
        %764 = vmatprep.subr.mxu0 0.0
        %765 = vmatpush2.msra.mxu0 0.0
        %766 = vmatprep.mubr.f32.mxu0 0.0
        %767 = vmatmul.mubr.f32.gmra.mxu0 %v691
        %v768 = vpop.f32.mrf.mxu0
        %v769 = vadd.f32 %v673, %v768
        %v770 = vpop.f32.mrf.mxu0
        %v771 = vadd.f32 %v673, %v770
        %772 = vmatprep.mubr.f32.mxu0 0.0
        %773 = vmatmul.mubr.f32.gmra.mxu0 %v694
        %v774 = vpop.f32.mrf.mxu0
        %v775 = vadd.f32 %v678, %v774
        %v776 = vpop.f32.mrf.mxu0
        %v777 = vadd.f32 %v678, %v776
        %778 = vmatprep.mubr.f32.mxu0 0.0
        %779 = vmatmul.mubr.f32.gmra.mxu0 %v697
        %v780 = vpop.f32.mrf.mxu0
        %v781 = vadd.f32 %v683, %v780
        %v782 = vpop.f32.mrf.mxu0
        %v783 = vadd.f32 %v683, %v782
        %784 = vmatprep.mubr.f32.mxu0 0.0
        %785 = vmatmul.mubr.f32.gmra.mxu0 %v700
        %v786 = vpop.f32.mrf.mxu0
        %v787 = vadd.f32 %v688, %v786
        %v788 = vpop.f32.mrf.mxu0
        %v789 = vadd.f32 %v688, %v788
        %790 = vdwg.mxu0
        %v791 = vmax.f32 %v769, 0.0
        %v792 = vmax.f32 %v771, 0.0
        %v793 = vmax.f32 %v775, 0.0
        %v794 = vmax.f32 %v777, 0.0
        %v795 = vmax.f32 %v781, 0.0
        %v796 = vmax.f32 %v783, 0.0
        %v797 = vmax.f32 %v787, 0.0
        %v798 = vmax.f32 %v789, 0.0
        %v799 = vld [vmem:[%s7] sm:$0xf]
        %v800 = vld [vmem:[%s8] sm:$0xf]
        %802 = vset.pattern.permute.xlu0 0
        %803 = vperm.xlu0 %802, %v800
        %v804 = vpop.permute.xlu0 %803
        %v807 = vsel %vm552, %v799, 0
        %809 = vmatprep.subr.mxu0 0.0
        %810 = vmatpush1.msra.mxu0 0.0
        %811 = vmatprep.subr.mxu0 0.0
        %812 = vmatpush1.msra.mxu0 0.0
        %813 = vmatprep.subr.mxu0 0.0
        %814 = vmatpush1.msra.mxu0 0.0
        %815 = vmatprep.subr.mxu0 0.0
        %816 = vmatpush1.msra.mxu0 0.0
        %817 = vmatprep.subr.mxu0 0.0
        %818 = vmatpush1.msra.mxu0 0.0
        %819 = vmatprep.subr.mxu0 0.0
        %820 = vmatpush1.msra.mxu0 0.0
        %821 = vmatprep.subr.mxu0 0.0
        %822 = vmatpush1.msra.mxu0 0.0
        %823 = vmatprep.subr.mxu0 0.0
        %824 = vmatpush1.msra.mxu0 0.0
        %825 = vmatprep.subr.mxu0 0.0
        %826 = vmatpush1.msra.mxu0 0.0
        %827 = vmatprep.subr.mxu0 0.0
        %828 = vmatpush1.msra.mxu0 0.0
        %829 = vmatprep.subr.mxu0 0.0
        %830 = vmatpush1.msra.mxu0 0.0
        %831 = vmatprep.subr.mxu0 0.0
        %832 = vmatpush1.msra.mxu0 0.0
        %833 = vmatprep.subr.mxu0 %v798
        %834 = vmatpush1.msra.mxu0 %v797
        %835 = vmatprep.subr.mxu0 %v796
        %836 = vmatpush1.msra.mxu0 %v795
        %837 = vmatprep.subr.mxu0 %v794
        %838 = vmatpush1.msra.mxu0 %v793
        %839 = vmatprep.subr.mxu0 %v792
        %840 = vmatpush1.msra.mxu0 %v791
        %841 = vmatprep.subr.mxu0 0.0
        %842 = vmatpush2.msra.mxu0 0.0
        %843 = vmatprep.subr.mxu0 0.0
        %844 = vmatpush2.msra.mxu0 0.0
        %845 = vmatprep.subr.mxu0 0.0
        %846 = vmatpush2.msra.mxu0 0.0
        %847 = vmatprep.subr.mxu0 0.0
        %848 = vmatpush2.msra.mxu0 0.0
        %849 = vmatprep.subr.mxu0 0.0
        %850 = vmatpush2.msra.mxu0 0.0
        %851 = vmatprep.subr.mxu0 0.0
        %852 = vmatpush2.msra.mxu0 0.0
        %853 = vmatprep.subr.mxu0 0.0
        %854 = vmatpush2.msra.mxu0 0.0
        %855 = vmatprep.subr.mxu0 0.0
        %856 = vmatpush2.msra.mxu0 0.0
        %857 = vmatprep.subr.mxu0 0.0
        %858 = vmatpush2.msra.mxu0 0.0
        %859 = vmatprep.subr.mxu0 0.0
        %860 = vmatpush2.msra.mxu0 0.0
        %861 = vmatprep.subr.mxu0 0.0
        %862 = vmatpush2.msra.mxu0 0.0
        %863 = vmatprep.subr.mxu0 0.0
        %864 = vmatpush2.msra.mxu0 0.0
        %865 = vmatprep.subr.mxu0 0.0
        %866 = vmatpush2.msra.mxu0 0.0
        %867 = vmatprep.subr.mxu0 0.0
        %868 = vmatpush2.msra.mxu0 0.0
        %869 = vmatprep.subr.mxu0 0.0
        %870 = vmatpush2.msra.mxu0 0.0
        %871 = vmatprep.subr.mxu0 0.0
        %872 = vmatpush2.msra.mxu0 0.0
        %873 = vmatprep.mubr.f32.mxu0 0.0
        %874 = vmatmul.mubr.f32.gmra.mxu0 %v807
        %v875 = vpop.f32.mrf.mxu0
        %v876 = vadd.f32 %v804, %v875
        %v877 = vpop.f32.mrf.mxu0
        %v878 = vadd.f32 %v804, %v877
        %879 = vdwg.mxu0
        %v882 = vcombine.low %v876, %v878
        %884 = vst [vmem:[%s393] sm:$0xff] %v882
        %s885 = sand.u32 %s248, 1
        %s886 = scalar_lea.sflag [#allocation4], %s885
        %s887 = sand.u32 %s248, 1
        %s888 = smul.addr %s887, 8
        %s889 = scalar_lea.vmem [#allocation7], %s888
        // Predicated region
        $region65: #{tpu_custom_call.1} parent=55 // pred_check
          %p890 = pneg %p258
        $region66: #{tpu_custom_call.1} parent=55 // pred_check_branch
          %892 = sbr.rel (%p890) target = $region68
        $region67: #{tpu_custom_call.1} parent=55 // pred_region
          %s893 = smul.u32 2, %s30
          %s895 = ssub.s32 128, 128
          %896 = vsyncadd %s886, %s895
          %s897 = smul.addr %s29, 2
          %s898 = sadd.s32 %s893, %s897
          %s899 = smul.addr %s898, 64
          %s900 = scalar_lea.hbm %s9, %s899
          %s902 = sshll.u32 %s889, 4
          %s903 = int_to_ptr.vmem [resolvable:$true] %s902
          %905 = dma.vmem_to_hbm [thread:$0]  %s903, 128, %s900, %s886
        $region68: #{tpu_custom_call.1} parent=55 // pred_fallthru
          _
      $region56: #{tpu_custom_call.1} parent=5 // pred_fallthru
        _
      %p906 = scmp.le.s32.totalorder 2, %s20
      // Predicated region
      $region69: #{tpu_custom_call.1} parent=5 // pred_check
        %p907 = pneg %p906
      $region70: #{tpu_custom_call.1} parent=5 // pred_check_branch
        %909 = sbr.rel (%p907) target = $region72
      $region71: #{tpu_custom_call.1} parent=5 // pred_region
        %s910 = ssub.s32 %s20, 2
        // Predicated region
        $region73: #{tpu_custom_call.1} parent=71 // pred_check
          %p911 = pneg %p264
        $region74: #{tpu_custom_call.1} parent=71 // pred_check_branch
          %913 = sbr.rel (%p911) target = $region76
        $region75: #{tpu_custom_call.1} parent=71 // pred_region
          %s914 = sand.u32 %s249, 1
          %s915 = scalar_lea.sflag [#allocation4], %s914
          %s916 = sand.u32 %s249, 1
          %s917 = smul.addr %s916, 8
          %s918 = scalar_lea.vmem [#allocation7], %s917
          %919 = dma.done %s915, 128
        $region76: #{tpu_custom_call.1} parent=71 // pred_fallthru
          _
      $region72: #{tpu_custom_call.1} parent=5 // pred_fallthru
        _
    $region6: #{tpu_custom_call.1} parent=1 // loop_footer
      %s24 = sadd.s32 1, %s20
    $region7: #{tpu_custom_call.1} parent=1 // loop_footer_branch
      %19 = sbr.rel target = $region3
    $region8: #{tpu_custom_call.1} parent=1 // loop_exit
      _
    %920 = vsyncpa [#allocation3], 1
    %s921 = scalar_lea.sflag [#allocation3], 1
    %922 = vsyncpa %s921, 1
    %923 = vsyncpa [#allocation6], 1
    %924 = vsyncpa [#allocation4], 1
    %s925 = scalar_lea.sflag [#allocation4], 1
    %926 = vsyncpa %s925, 1

</llo_original>
